<compile_context>
chip_gen: v6e
topology: v6e:2x2x1
jax: 0.10.0
libtpu: 0.0.40
codegen_flags: <defaults>
</compile_context>

<pallas_src>
import jax
import jax.numpy as jnp
import numpy as np
from jax.experimental import pallas as pl
from jax.experimental.pallas import tpu as pltpu

_LANES = 128
# params table layout (per batch row, 16 f32 scalars, SMEM-resident):
#   [0:9]  rotation (row-major)   [9:12] translation
#   [12]   focal_x   [13] focal_y   [14:16] center (cx, cy)


def _camera_kernel(params_ref, pts_ref, out_ref):
    b = pl.program_id(0)

    # Dense (TS, 128) component planes -- full (8,128) vreg occupancy.
    x = pts_ref[0, 0, :, :]
    y = pts_ref[0, 1, :, :]
    z = pts_ref[0, 2, :, :]

    # Per-batch scalars from SMEM (scalar unit; no MXU, no extra VMEM DMA).
    r00 = params_ref[b, 0]; r01 = params_ref[b, 1]; r02 = params_ref[b, 2]
    r10 = params_ref[b, 3]; r11 = params_ref[b, 4]; r12 = params_ref[b, 5]
    r20 = params_ref[b, 6]; r21 = params_ref[b, 7]; r22 = params_ref[b, 8]
    tx = params_ref[b, 9]; ty = params_ref[b, 10]; tz = params_ref[b, 11]
    fx = params_ref[b, 12]; fy = params_ref[b, 13]
    cx = params_ref[b, 14]; cy = params_ref[b, 15]

    # cam = R @ p + t  as 9 scalar-broadcast FMAs on the VPU.
    cam_x = r00 * x + r01 * y + r02 * z + tx
    cam_y = r10 * x + r11 * y + r12 * z + ty
    cam_z = r20 * x + r21 * y + r22 * z + tz

    # One exact reciprocal instead of two divides (exact for the tight rtol).
    inv_z = pl.reciprocal(cam_z)

    out_ref[0, 0, :, :] = (cam_x * (fx * inv_z) + cx).astype(out_ref.dtype)
    out_ref[0, 1, :, :] = (cam_y * (fy * inv_z) + cy).astype(out_ref.dtype)


def perspective_camera_holo_planar(points_p, rotation, translation,
                                   focal_x, focal_y, center, *,
                                   block_points=8192):
    """Fast path.  points_p: [B, 3, N] (planar/SoA) -> [B, 2, N]."""
    B, three, N = points_p.shape
    assert three == 3

    # Pack all per-batch scalars into one small SMEM-resident table [B, 16].
    params = jnp.concatenate(
        [rotation.reshape(B, 9).astype(jnp.float32),
         translation.reshape(B, 3).astype(jnp.float32),
         focal_x.reshape(B, 1).astype(jnp.float32),
         focal_y.reshape(B, 1).astype(jnp.float32),
         center.reshape(B, 2).astype(jnp.float32)], axis=-1)

    n_pad = pl.cdiv(N, _LANES) * _LANES
    if n_pad != N:
        points_p = jnp.pad(points_p, ((0, 0), (0, 0), (0, n_pad - N)))
    S = n_pad // _LANES
    pts4 = points_p.reshape(B, 3, S, _LANES)     # free reshape (contiguous)

    # N-tile size in rows of 128 lanes; multiple of 8 or equal to full S.
    ts = min(max(block_points // _LANES, 1), S)
    if ts != S:
        ts = min(max(8, (ts // 8) * 8), S)
    n_tiles = pl.cdiv(S, ts)

    out4 = pl.pallas_call(
        _camera_kernel,
        out_shape=jax.ShapeDtypeStruct((B, 2, S, _LANES), points_p.dtype),
        grid=(B, n_tiles),
        in_specs=[
            pl.BlockSpec(memory_space=pltpu.SMEM),                        # params [B,16]
            pl.BlockSpec((1, 3, ts, _LANES), lambda b, n: (b, 0, n, 0)),  # points
        ],
        out_specs=pl.BlockSpec((1, 2, ts, _LANES), lambda b, n: (b, 0, n, 0)),
        compiler_params=pltpu.CompilerParams(
            dimension_semantics=("parallel", "parallel"),
            vmem_limit_bytes=32 * 1024 * 1024,
        ),
    )(params, pts4)

    out = out4.reshape(B, 2, n_pad)
    return out[:, :, :N] if n_pad != N else out


def perspective_camera_holo(points, rotation, translation,
                            focal_x, focal_y, center, *, block_points=8192):
    """Drop-in PyTorch-layout wrapper: points [B, N, 3] -> [B, N, 2].

    NOTE: each transpose here is a full extra HBM pass; prefer
    `perspective_camera_holo_planar` when the producer/consumer can use the
    planar [B, 3, N] layout.
    """
    pts_p = jnp.transpose(points, (0, 2, 1))
    out_p = perspective_camera_holo_planar(pts_p, rotation, translation,
                                           focal_x, focal_y, center,
                                           block_points=block_points)
    return jnp.transpose(out_p, (0, 2, 1))


def _reference(points, rotation, translation, focal_x, focal_y, center):
    # Pure-JAX mirror of the PyTorch forward, fully in f32 (no MXU) so the
    # comparison is not polluted by default matmul precision.
    cam = jnp.sum(rotation[:, None, :, :] * points[:, :, None, :], axis=-1)
    cam = cam + translation[:, None, :]
    img = cam[..., :2] / cam[..., 2:3]
    f = jnp.stack([focal_x, focal_y], axis=-1)[:, None, :]
    return img * f + center[:, None, :]


if __name__ == "__main__":
    B, N = 2, 2048
    key = jax.random.PRNGKey(0)
    k_pts, k_rot = jax.random.split(key)

    # Deterministic "parameter" init: identity-ish rotation, z pushed away from
    # 0 so the perspective divide is well conditioned.
    points = jax.random.uniform(k_pts, (B, N, 3), jnp.float32, minval=-1.0, maxval=1.0)
    rotation = (jnp.eye(3, dtype=jnp.float32)[None].repeat(B, axis=0)
                + 0.01 * jax.random.normal(k_rot, (B, 3, 3), jnp.float32))
    translation = jnp.array([[0.0, 0.0, 3.0], [0.1, -0.1, 4.0]], dtype=jnp.float32)
    focal_x = jnp.full((B,), 5000.0, dtype=jnp.float32)
    focal_y = jnp.full((B,), 5000.0, dtype=jnp.float32)
    center = jnp.array([[112.0, 112.0], [96.0, 128.0]], dtype=jnp.float32)

    ref = _reference(points, rotation, translation, focal_x, focal_y, center)

    # Planar fast path (no wrapper transposes); small block to exercise N tiling.
    pts_planar = jnp.transpose(points, (0, 2, 1))      # producer-side layout
    out_planar = jax.block_until_ready(
        perspective_camera_holo_planar(pts_planar, rotation, translation,
                                       focal_x, focal_y, center,
                                       block_points=1024))
    np.testing.assert_allclose(np.asarray(out_planar),
                               np.asarray(jnp.transpose(ref, (0, 2, 1))),
                               rtol=1e-5, atol=1e-3)

    # PyTorch-layout compatibility wrapper (module contract [B,N,3] -> [B,N,2]).
    out = jax.block_until_ready(
        perspective_camera_holo(points, rotation, translation,
                                focal_x, focal_y, center))
    np.testing.assert_allclose(np.asarray(out), np.asarray(ref),
                               rtol=1e-5, atol=1e-3)

    assert out.shape == (B, N, 2) and out.dtype == jnp.float32
    assert out_planar.shape == (B, 2, N)
    print("KERNEL_OK")
</pallas_src>

<mosaic_0001>
module attributes {stable_mosaic.version = 11 : i64} {
  func.func @_camera_kernel(%arg0: i32, %arg1: i32, %arg2: memref<2x16xf32, #tpu.memory_space<smem>>, %arg3: memref<1x3x8x128xf32, #tpu.memory_space<vmem>>, %arg4: memref<1x2x8x128xf32, #tpu.memory_space<vmem>>) attributes {dimension_semantics = [#tpu.dimension_semantics<parallel>, #tpu.dimension_semantics<parallel>], iteration_bounds = array<i64: 2, 2>, scalar_prefetch = 0 : i64, scratch_operands = 0 : i64, tpu.core_type = #tpu.core_type<tc>, window_params = [{transform_indices = @transform_0, window_bounds = array<i64: 2, 16>}, {transform_indices = @transform_1, window_bounds = array<i64: 1, 3, 8, 128>}, {transform_indices = @transform_2, window_bounds = array<i64: 1, 2, 8, 128>}]} {
    %c0 = arith.constant 0 : index
    %c0_0 = arith.constant 0 : index
    %c0_1 = arith.constant 0 : index
    %c0_2 = arith.constant 0 : index
    %0 = vector.load %arg3[%c0, %c0_0, %c0_1, %c0_2] : memref<1x3x8x128xf32, #tpu.memory_space<vmem>>, vector<1x1x8x128xf32>
    %1 = vector.shape_cast %0 : vector<1x1x8x128xf32> to vector<8x128xf32>
    %c0_3 = arith.constant 0 : index
    %c1 = arith.constant 1 : index
    %c0_4 = arith.constant 0 : index
    %c0_5 = arith.constant 0 : index
    %2 = vector.load %arg3[%c0_3, %c1, %c0_4, %c0_5] : memref<1x3x8x128xf32, #tpu.memory_space<vmem>>, vector<1x1x8x128xf32>
    %3 = vector.shape_cast %2 : vector<1x1x8x128xf32> to vector<8x128xf32>
    %c0_6 = arith.constant 0 : index
    %c2 = arith.constant 2 : index
    %c0_7 = arith.constant 0 : index
    %c0_8 = arith.constant 0 : index
    %4 = vector.load %arg3[%c0_6, %c2, %c0_7, %c0_8] : memref<1x3x8x128xf32, #tpu.memory_space<vmem>>, vector<1x1x8x128xf32>
    %5 = vector.shape_cast %4 : vector<1x1x8x128xf32> to vector<8x128xf32>
    %6 = arith.index_cast %arg0 : i32 to index
    %c0_9 = arith.constant 0 : index
    %7 = memref.load %arg2[%6, %c0_9] : memref<2x16xf32, #tpu.memory_space<smem>>
    %8 = arith.index_cast %arg0 : i32 to index
    %c1_10 = arith.constant 1 : index
    %9 = memref.load %arg2[%8, %c1_10] : memref<2x16xf32, #tpu.memory_space<smem>>
    %10 = arith.index_cast %arg0 : i32 to index
    %c2_11 = arith.constant 2 : index
    %11 = memref.load %arg2[%10, %c2_11] : memref<2x16xf32, #tpu.memory_space<smem>>
    %12 = arith.index_cast %arg0 : i32 to index
    %c3 = arith.constant 3 : index
    %13 = memref.load %arg2[%12, %c3] : memref<2x16xf32, #tpu.memory_space<smem>>
    %14 = arith.index_cast %arg0 : i32 to index
    %c4 = arith.constant 4 : index
    %15 = memref.load %arg2[%14, %c4] : memref<2x16xf32, #tpu.memory_space<smem>>
    %16 = arith.index_cast %arg0 : i32 to index
    %c5 = arith.constant 5 : index
    %17 = memref.load %arg2[%16, %c5] : memref<2x16xf32, #tpu.memory_space<smem>>
    %18 = arith.index_cast %arg0 : i32 to index
    %c6 = arith.constant 6 : index
    %19 = memref.load %arg2[%18, %c6] : memref<2x16xf32, #tpu.memory_space<smem>>
    %20 = arith.index_cast %arg0 : i32 to index
    %c7 = arith.constant 7 : index
    %21 = memref.load %arg2[%20, %c7] : memref<2x16xf32, #tpu.memory_space<smem>>
    %22 = arith.index_cast %arg0 : i32 to index
    %c8 = arith.constant 8 : index
    %23 = memref.load %arg2[%22, %c8] : memref<2x16xf32, #tpu.memory_space<smem>>
    %24 = arith.index_cast %arg0 : i32 to index
    %c9 = arith.constant 9 : index
    %25 = memref.load %arg2[%24, %c9] : memref<2x16xf32, #tpu.memory_space<smem>>
    %26 = arith.index_cast %arg0 : i32 to index
    %c10 = arith.constant 10 : index
    %27 = memref.load %arg2[%26, %c10] : memref<2x16xf32, #tpu.memory_space<smem>>
    %28 = arith.index_cast %arg0 : i32 to index
    %c11 = arith.constant 11 : index
    %29 = memref.load %arg2[%28, %c11] : memref<2x16xf32, #tpu.memory_space<smem>>
    %30 = arith.index_cast %arg0 : i32 to index
    %c12 = arith.constant 12 : index
    %31 = memref.load %arg2[%30, %c12] : memref<2x16xf32, #tpu.memory_space<smem>>
    %32 = arith.index_cast %arg0 : i32 to index
    %c13 = arith.constant 13 : index
    %33 = memref.load %arg2[%32, %c13] : memref<2x16xf32, #tpu.memory_space<smem>>
    %34 = arith.index_cast %arg0 : i32 to index
    %c14 = arith.constant 14 : index
    %35 = memref.load %arg2[%34, %c14] : memref<2x16xf32, #tpu.memory_space<smem>>
    %36 = arith.index_cast %arg0 : i32 to index
    %c15 = arith.constant 15 : index
    %37 = memref.load %arg2[%36, %c15] : memref<2x16xf32, #tpu.memory_space<smem>>
    %38 = vector.broadcast %7 : f32 to vector<8x128xf32>
    %39 = arith.mulf %38, %1 : vector<8x128xf32>
    %40 = vector.broadcast %9 : f32 to vector<8x128xf32>
    %41 = arith.mulf %40, %3 : vector<8x128xf32>
    %42 = arith.addf %39, %41 : vector<8x128xf32>
    %43 = vector.broadcast %11 : f32 to vector<8x128xf32>
    %44 = arith.mulf %43, %5 : vector<8x128xf32>
    %45 = arith.addf %42, %44 : vector<8x128xf32>
    %46 = vector.broadcast %25 : f32 to vector<8x128xf32>
    %47 = arith.addf %45, %46 : vector<8x128xf32>
    %48 = vector.broadcast %13 : f32 to vector<8x128xf32>
    %49 = arith.mulf %48, %1 : vector<8x128xf32>
    %50 = vector.broadcast %15 : f32 to vector<8x128xf32>
    %51 = arith.mulf %50, %3 : vector<8x128xf32>
    %52 = arith.addf %49, %51 : vector<8x128xf32>
    %53 = vector.broadcast %17 : f32 to vector<8x128xf32>
    %54 = arith.mulf %53, %5 : vector<8x128xf32>
    %55 = arith.addf %52, %54 : vector<8x128xf32>
    %56 = vector.broadcast %27 : f32 to vector<8x128xf32>
    %57 = arith.addf %55, %56 : vector<8x128xf32>
    %58 = vector.broadcast %19 : f32 to vector<8x128xf32>
    %59 = arith.mulf %58, %1 : vector<8x128xf32>
    %60 = vector.broadcast %21 : f32 to vector<8x128xf32>
    %61 = arith.mulf %60, %3 : vector<8x128xf32>
    %62 = arith.addf %59, %61 : vector<8x128xf32>
    %63 = vector.broadcast %23 : f32 to vector<8x128xf32>
    %64 = arith.mulf %63, %5 : vector<8x128xf32>
    %65 = arith.addf %62, %64 : vector<8x128xf32>
    %66 = vector.broadcast %29 : f32 to vector<8x128xf32>
    %67 = arith.addf %65, %66 : vector<8x128xf32>
    %68 = tpu.reciprocal %67 : vector<8x128xf32> -> vector<8x128xf32>
    %69 = vector.broadcast %31 : f32 to vector<8x128xf32>
    %70 = arith.mulf %69, %68 : vector<8x128xf32>
    %71 = arith.mulf %47, %70 : vector<8x128xf32>
    %72 = vector.broadcast %35 : f32 to vector<8x128xf32>
    %73 = arith.addf %71, %72 : vector<8x128xf32>
    %c0_12 = arith.constant 0 : index
    %c0_13 = arith.constant 0 : index
    %c0_14 = arith.constant 0 : index
    %c0_15 = arith.constant 0 : index
    %74 = vector.load %arg4[%c0_12, %c0_13, %c0_14, %c0_15] : memref<1x2x8x128xf32, #tpu.memory_space<vmem>>, vector<1x1x8x128xf32>
    %75 = vector.shape_cast %74 : vector<1x1x8x128xf32> to vector<8x128xf32>
    %76 = vector.shape_cast %73 : vector<8x128xf32> to vector<1x1x8x128xf32>
    tpu.vector_store %arg4[%c0_12, %c0_13, %c0_14, %c0_15], %76 {strides = array<i32>} : memref<1x2x8x128xf32, #tpu.memory_space<vmem>>, vector<1x1x8x128xf32>,
    %77 = vector.broadcast %33 : f32 to vector<8x128xf32>
    %78 = arith.mulf %77, %68 : vector<8x128xf32>
    %79 = arith.mulf %57, %78 : vector<8x128xf32>
    %80 = vector.broadcast %37 : f32 to vector<8x128xf32>
    %81 = arith.addf %79, %80 : vector<8x128xf32>
    %c0_16 = arith.constant 0 : index
    %c1_17 = arith.constant 1 : index
    %c0_18 = arith.constant 0 : index
    %c0_19 = arith.constant 0 : index
    %82 = vector.load %arg4[%c0_16, %c1_17, %c0_18, %c0_19] : memref<1x2x8x128xf32, #tpu.memory_space<vmem>>, vector<1x1x8x128xf32>
    %83 = vector.shape_cast %82 : vector<1x1x8x128xf32> to vector<8x128xf32>
    %84 = vector.shape_cast %81 : vector<8x128xf32> to vector<1x1x8x128xf32>
    tpu.vector_store %arg4[%c0_16, %c1_17, %c0_18, %c0_19], %84 {strides = array<i32>} : memref<1x2x8x128xf32, #tpu.memory_space<vmem>>, vector<1x1x8x128xf32>,
    return
  }
  func.func @transform_0(%arg0: i32, %arg1: i32) -> (i32, i32) {
    %c0_i32 = arith.constant 0 : i32
    %c0_i32_0 = arith.constant 0 : i32
    %c0_i32_1 = arith.constant 0 : i32
    return %c0_i32, %c0_i32_0 : i32, i32
  }
  func.func @transform_1(%arg0: i32, %arg1: i32) -> (i32, i32, i32, i32) {
    %c0_i32 = arith.constant 0 : i32
    %c0_i32_0 = arith.constant 0 : i32
    %c0_i32_1 = arith.constant 0 : i32
    return %arg0, %c0_i32, %arg1, %c0_i32_0 : i32, i32, i32, i32
  }
  func.func @transform_2(%arg0: i32, %arg1: i32) -> (i32, i32, i32, i32) {
    %c0_i32 = arith.constant 0 : i32
    %c0_i32_0 = arith.constant 0 : i32
    %c0_i32_1 = arith.constant 0 : i32
    return %arg0, %c0_i32, %arg1, %c0_i32_0 : i32, i32, i32, i32
  }
}

</mosaic_0001>

<llo_original>
// kernel: tpu_custom_call.1
$region0: #{tpu_custom_call.1}
  #allocation0 [shape = 'u32[]', space=smem, size = 0x4, offset = 0x4, fixed_abs, tag = 'smem constant byte address 0x4 - core index']
  #allocation1 [shape = 'u32[144,128]{1,0:T(1,128)}', space=vmem, size = 0x12000, scoped, tag = 'internal scratch']
  %s0 = inlined_call_operand.hbm [shape: f32[2,16], index: 0, kind: input, shape index: {}]
  %s1 = inlined_call_operand.hbm [shape: f32[2,3,16,128], index: 1, kind: input, shape index: {}]
  %s2 = inlined_call_operand.hbm [shape: f32[2,2,16,128], index: 2, kind: output, shape index: {}]
  %s3 = sld [smem:[#allocation0]]
  $region49: #{tpu_custom_call.1} parent=0
    _
  %s5 = ssub.s32 1, %s3
  %s6 = scalar_select 0, %s5, %s3
  $region1: #{tpu_custom_call.1} parent=0
    #allocation2 [shape = 'u8[1024]{0}', space=smem, size = 0x400, scoped, tag = 'input window, operand 0, single buffered']
    #allocation3 [shape = 's32[2]{0}', space=sflag, size = 0x8, scoped, tag = 'scoped memory for tpu_custom_call.1']
    #allocation4 [shape = 's32[2]{0}', space=sflag, size = 0x8, scoped, tag = 'scoped memory for tpu_custom_call.1']
    #allocation5 [shape = 's32[2]{0}', space=sflag, size = 0x8, scoped, tag = 'scoped memory for tpu_custom_call.1']
    #allocation6 [shape = 'u8[24576]{0}', space=vmem, size = 0x6000, scoped, tag = 'input window, operand 1']
    #allocation7 [shape = 'u8[16384]{0}', space=vmem, size = 0x4000, scoped, tag = 'output window, operand 0']
    %7 = vsyncpa [#allocation5], 0
    %8 = vsyncpa [#allocation3], 0
    %s9 = scalar_lea.sflag [#allocation3], 1
    %10 = vsyncpa %s9, 0
    %11 = vsyncpa [#allocation4], 0
    %s12 = scalar_lea.sflag [#allocation4], 1
    %13 = vsyncpa %s12, 0
    loop: start=0, step=1, limit=6
    $region2: #{tpu_custom_call.1} parent=1 // loop_pre_header
      _
    $region3: #{tpu_custom_call.1} parent=1 // loop_header
      %s15 = sphi 0, %s19
      %p16 = scmp.ge.s32.totalorder %s15, 6
      %s22 = sphi 0, %s34
      %s23 = sphi 0, %s30
      %s24 = sphi 0, %s22
      %s25 = sphi 0, %s23
      %s26 = sphi 0, %s24
      %s27 = sphi 0, %s25
      %s35 = sphi 0, %s35
      %s37 = sphi 0, %s35
      %s38 = sphi 0, %s37
      %s52 = sphi 0, %s38
      %s60 = sphi 0, %s62
      %s63 = sphi 0, %s60
      %s64 = sphi 0, %s63
      %s80 = sphi 0, %s64
      %s88 = sphi 0, %s90
      %s91 = sphi 0, %s88
      %s92 = sphi 0, %s91
      %s108 = sphi 0, %s92
    $region4: #{tpu_custom_call.1} parent=1 // loop_header_branch
      %18 = sbr.rel (%p16) target = $region8
    $region5: #{tpu_custom_call.1} parent=1 // loop_body
      %s20 = ssub.s32 %s15, 1
      %s21 = ssub.s32 %s15, 2
      %s28 = sadd.s32 1, %s23
      %p29 = scmp.ge.s32.totalorder %s28, 2
      %s30 = scalar_select %p29, 0, %s28
      %s31 = sadd.s32 1, %s22
      %s32 = scalar_select %p29, %s31, %s22
      %p33 = scmp.ge.s32.totalorder %s32, 2
      %s34 = scalar_select %p33, 0, %s32
      %s36 = sadd.s32 %s35, 1
      %p39 = scmp.eq.s32.totalorder %s15, 3
      %p40 = scmp.ne.s32.totalorder %s35, %s37
      %p41 = scmp.eq.s32.totalorder %s15, 0
      %p42 = por %p40, %p41
      %p43 = scmp.ne.s32.totalorder %s35, %s37
      %p44 = scmp.eq.s32.totalorder %s20, 3
      %p45 = por %p43, %p44
      %p46 = scmp.ne.s32.totalorder %s37, %s38
      %p47 = scmp.eq.s32.totalorder %s20, 0
      %p48 = por %p46, %p47
      %p49 = scmp.ne.s32.totalorder %s37, %s38
      %p50 = scmp.eq.s32.totalorder %s21, 3
      %p51 = por %p49, %p50
      %p53 = scmp.ne.s32.totalorder %s38, %s52
      %p54 = scmp.eq.s32.totalorder %s21, 0
      %p55 = por %p53, %p54
      %s56 = ssub.s32 %s22, %s34
      %s57 = ssub.s32 %s23, %s30
      %s58 = sor.u32 %s56, %s57
      %p59 = scmp.eq.s32.totalorder %s58, 0
      %s61 = sadd.s32 %s60, 1
      %s62 = scalar_select %p59, %s60, %s61
      %p65 = pneg %p59
      %p66 = scmp.eq.s32.totalorder %s15, 3
      %p67 = por %p65, %p66
      %p68 = scmp.ne.s32.totalorder %s60, %s63
      %p69 = scmp.eq.s32.totalorder %s15, 0
      %p70 = por %p68, %p69
      %p71 = scmp.ne.s32.totalorder %s60, %s63
      %p72 = scmp.eq.s32.totalorder %s20, 3
      %p73 = por %p71, %p72
      %p74 = scmp.ne.s32.totalorder %s63, %s64
      %p75 = scmp.eq.s32.totalorder %s20, 0
      %p76 = por %p74, %p75
      %p77 = scmp.ne.s32.totalorder %s63, %s64
      %p78 = scmp.eq.s32.totalorder %s21, 3
      %p79 = por %p77, %p78
      %p81 = scmp.ne.s32.totalorder %s64, %s80
      %p82 = scmp.eq.s32.totalorder %s21, 0
      %p83 = por %p81, %p82
      %s84 = ssub.s32 %s22, %s34
      %s85 = ssub.s32 %s23, %s30
      %s86 = sor.u32 %s84, %s85
      %p87 = scmp.eq.s32.totalorder %s86, 0
      %s89 = sadd.s32 %s88, 1
      %s90 = scalar_select %p87, %s88, %s89
      %p93 = pneg %p87
      %p94 = scmp.eq.s32.totalorder %s15, 3
      %p95 = por %p93, %p94
      %p96 = scmp.ne.s32.totalorder %s88, %s91
      %p97 = scmp.eq.s32.totalorder %s15, 0
      %p98 = por %p96, %p97
      %p99 = scmp.ne.s32.totalorder %s88, %s91
      %p100 = scmp.eq.s32.totalorder %s20, 3
      %p101 = por %p99, %p100
      %p102 = scmp.ne.s32.totalorder %s91, %s92
      %p103 = scmp.eq.s32.totalorder %s20, 0
      %p104 = por %p102, %p103
      %p105 = scmp.ne.s32.totalorder %s91, %s92
      %p106 = scmp.eq.s32.totalorder %s21, 3
      %p107 = por %p105, %p106
      %p109 = scmp.ne.s32.totalorder %s92, %s108
      %p110 = scmp.eq.s32.totalorder %s21, 0
      %p111 = por %p109, %p110
      %p112 = scmp.le.s32.totalorder 1, %s15
      %p113 = scmp.lt.s32.totalorder %s15, 5
      %p114 = pnand %p112, %p113
      %p115 = pneg %p114
      // Predicated region
      $region9: #{tpu_custom_call.1} parent=5 // pred_check
        _
      $region10: #{tpu_custom_call.1} parent=5 // pred_check_branch
        %117 = sbr.rel (%p114) target = $region12
      $region11: #{tpu_custom_call.1} parent=5 // pred_region
        %s118 = ssub.s32 %s15, 1
        // Predicated region
        $region13: #{tpu_custom_call.1} parent=11 // pred_check
          %p119 = pneg %p48
        $region14: #{tpu_custom_call.1} parent=11 // pred_check_branch
          %121 = sbr.rel (%p119) target = $region16
        $region15: #{tpu_custom_call.1} parent=11 // pred_region
          %s123 = ssub.s32 32, 32
          %124 = vsyncadd [#allocation5], %s123
          %127 = dma.hbm_to_smem %s0, 32, [#allocation2], [#allocation5]
        $region16: #{tpu_custom_call.1} parent=11 // pred_fallthru
          _
      $region12: #{tpu_custom_call.1} parent=5 // pred_fallthru
        _
      %p128 = scmp.lt.s32.totalorder %s15, 4
      // Predicated region
      $region17: #{tpu_custom_call.1} parent=5 // pred_check
        %p129 = pneg %p128
      $region18: #{tpu_custom_call.1} parent=5 // pred_check_branch
        %131 = sbr.rel (%p129) target = $region20
      $region19: #{tpu_custom_call.1} parent=5 // pred_region
        // Predicated region
        $region21: #{tpu_custom_call.1} parent=19 // pred_check
          %p132 = pneg %p70
        $region22: #{tpu_custom_call.1} parent=19 // pred_check_branch
          %134 = sbr.rel (%p132) target = $region24
        $region23: #{tpu_custom_call.1} parent=19 // pred_region
          %s135 = sand.u32 %s60, 1
          %s136 = scalar_lea.sflag [#allocation3], %s135
          %s137 = sand.u32 %s60, 1
          %s138 = smul.addr %s137, 24
          %s139 = scalar_lea.vmem [#allocation6], %s138
          %s141 = ssub.s32 384, 384
          %142 = vsyncadd %s136, %s141
          %s143 = smul.addr %s22, 6
          %s144 = sadd.s32 %s23, %s143
          %s145 = smul.addr %s144, 128
          %s146 = scalar_lea.hbm %s1, %s145
          %s147 = sshll.u32 %s139, 4
          %s148 = int_to_ptr.vmem [resolvable:$true] %s147
          %153 = dma.hbm_to_vmem [thread:$0]  %s146, 384, %s148, %s136, 256, 128, 8
        $region24: #{tpu_custom_call.1} parent=19 // pred_fallthru
          _
      $region20: #{tpu_custom_call.1} parent=5 // pred_fallthru
        _
      %p154 = scmp.le.s32.totalorder 1, %s15
      %p155 = scmp.lt.s32.totalorder %s15, 5
      %p156 = pnand %p154, %p155
      %p157 = pneg %p156
      // Predicated region
      $region25: #{tpu_custom_call.1} parent=5 // pred_check
        _
      $region26: #{tpu_custom_call.1} parent=5 // pred_check_branch
        %159 = sbr.rel (%p156) target = $region28
      $region27: #{tpu_custom_call.1} parent=5 // pred_region
        %s160 = ssub.s32 %s15, 1
        // Predicated region
        $region29: #{tpu_custom_call.1} parent=27 // pred_check
          %p161 = pneg %p48
        $region30: #{tpu_custom_call.1} parent=27 // pred_check_branch
          %163 = sbr.rel (%p161) target = $region32
        $region31: #{tpu_custom_call.1} parent=27 // pred_region
          %164 = dma.done [#allocation5], 32
        $region32: #{tpu_custom_call.1} parent=27 // pred_fallthru
          _
        %s165 = sand.u32 %s63, 1
        %s166 = scalar_lea.sflag [#allocation3], %s165
        %s167 = sand.u32 %s63, 1
        %s168 = smul.addr %s167, 24
        %s169 = scalar_lea.vmem [#allocation6], %s168
        // Predicated region
        $region33: #{tpu_custom_call.1} parent=27 // pred_check
          %p170 = pneg %p76
        $region34: #{tpu_custom_call.1} parent=27 // pred_check_branch
          %172 = sbr.rel (%p170) target = $region36
        $region35: #{tpu_custom_call.1} parent=27 // pred_region
          %173 = dma.done %s166, 384
        $region36: #{tpu_custom_call.1} parent=27 // pred_fallthru
          _
        %174 = sfence
        %p175 = pneg %p48
        %p176 = pneg %p45
        %s177 = sand.u32 %s63, 1
        %s178 = scalar_lea.sflag [#allocation3], %s177
        %s179 = sand.u32 %s63, 1
        %s180 = smul.addr %s179, 24
        %s181 = scalar_lea.vmem [#allocation6], %s180
        %p182 = pneg %p76
        %p183 = pneg %p73
        %p184 = pneg %p104
        %p185 = pneg %p101
        %s186 = sand.u32 %s91, 1
        %s187 = scalar_lea.sflag [#allocation4], %s186
        %s188 = sand.u32 %s91, 1
        %s189 = smul.addr %s188, 16
        %s190 = scalar_lea.vmem [#allocation7], %s189
        %v191 = vld [vmem:[%s169] sm:$0xff]
        %s192 = scalar_lea.vmem %s169, 8 [#allocation6]
        %v193 = vld [vmem:[%s192] sm:$0xff]
        %s194 = scalar_lea.vmem %s169, 16 [#allocation6]
        %v195 = vld [vmem:[%s194] sm:$0xff]
        %s196 = smul.u32 %s24, 128
        %s197 = sld [smem:[#allocation2 + %s196]]
        %s198 = sadd.s32 %s196, 1
        %s199 = sld [smem:[#allocation2 + %s198]]
        %s200 = sadd.s32 %s196, 2
        %s201 = sld [smem:[#allocation2 + %s200]]
        %s202 = sadd.s32 %s196, 3
        %s203 = sld [smem:[#allocation2 + %s202]]
        %s204 = sadd.s32 %s196, 4
        %s205 = sld [smem:[#allocation2 + %s204]]
        %s206 = sadd.s32 %s196, 5
        %s207 = sld [smem:[#allocation2 + %s206]]
        %s208 = sadd.s32 %s196, 6
        %s209 = sld [smem:[#allocation2 + %s208]]
        %s210 = sadd.s32 %s196, 7
        %s211 = sld [smem:[#allocation2 + %s210]]
        %s212 = sadd.s32 %s196, 8
        %s213 = sld [smem:[#allocation2 + %s212]]
        %s214 = sadd.s32 %s196, 9
        %s215 = sld [smem:[#allocation2 + %s214]]
        %s216 = sadd.s32 %s196, 10
        %s217 = sld [smem:[#allocation2 + %s216]]
        %s218 = sadd.s32 %s196, 11
        %s219 = sld [smem:[#allocation2 + %s218]]
        %s220 = sadd.s32 %s196, 12
        %s221 = sld [smem:[#allocation2 + %s220]]
        %s222 = sadd.s32 %s196, 13
        %s223 = sld [smem:[#allocation2 + %s222]]
        %s224 = sadd.s32 %s196, 14
        %s225 = sld [smem:[#allocation2 + %s224]]
        %s226 = sadd.s32 %s196, 15
        %s227 = sld [smem:[#allocation2 + %s226]]
        %v228 = vstv %s197
        %v229 = vmul.f32 %v228, %v191
        %v230 = vstv %s199
        %v231 = vmul.f32 %v230, %v193
        %v232 = vadd.f32 %v229, %v231
        %v233 = vstv %s201
        %v234 = vmul.f32 %v233, %v195
        %v235 = vadd.f32 %v232, %v234
        %v236 = vstv %s215
        %v237 = vadd.f32 %v235, %v236
        %v238 = vstv %s203
        %v239 = vmul.f32 %v238, %v191
        %v240 = vstv %s205
        %v241 = vmul.f32 %v240, %v193
        %v242 = vadd.f32 %v239, %v241
        %v243 = vstv %s207
        %v244 = vmul.f32 %v243, %v195
        %v245 = vadd.f32 %v242, %v244
        %v246 = vstv %s217
        %v247 = vadd.f32 %v245, %v246
        %v248 = vstv %s209
        %v249 = vmul.f32 %v248, %v191
        %v250 = vstv %s211
        %v251 = vmul.f32 %v250, %v193
        %v252 = vadd.f32 %v249, %v251
        %v253 = vstv %s213
        %v254 = vmul.f32 %v253, %v195
        %v255 = vadd.f32 %v252, %v254
        %v256 = vstv %s219
        %v257 = vadd.f32 %v255, %v256
        %v258 = vrcp.pop %v257
        %v259 = vstv %s221
        %v260 = vmul.f32 %v259, %v258
        %v261 = vmul.f32 %v237, %v260
        %v262 = vstv %s225
        %v263 = vadd.f32 %v261, %v262
        %264 = vst [vmem:[%s190] sm:$0xff] %v263
        %v265 = vstv %s223
        %v266 = vmul.f32 %v265, %v258
        %v267 = vmul.f32 %v247, %v266
        %v268 = vstv %s227
        %v269 = vadd.f32 %v267, %v268
        %s270 = scalar_lea.vmem %s190, 8 [#allocation7]
        %271 = vst [vmem:[%s270] sm:$0xff] %v269
        %s272 = sand.u32 %s91, 1
        %s273 = scalar_lea.sflag [#allocation4], %s272
        %s274 = sand.u32 %s91, 1
        %s275 = smul.addr %s274, 16
        %s276 = scalar_lea.vmem [#allocation7], %s275
        // Predicated region
        $region37: #{tpu_custom_call.1} parent=27 // pred_check
          %p277 = pneg %p101
        $region38: #{tpu_custom_call.1} parent=27 // pred_check_branch
          %279 = sbr.rel (%p277) target = $region40
        $region39: #{tpu_custom_call.1} parent=27 // pred_region
          %s281 = ssub.s32 256, 256
          %282 = vsyncadd %s273, %s281
          %s283 = smul.addr %s24, 4
          %s284 = sadd.s32 %s25, %s283
          %s285 = smul.addr %s284, 128
          %s286 = scalar_lea.hbm %s2, %s285
          %s287 = sshll.u32 %s276, 4
          %s288 = int_to_ptr.vmem [resolvable:$true] %s287
          %293 = dma.vmem_to_hbm [thread:$0]  %s288, 256, %s286, %s273, 128, 256, 8
        $region40: #{tpu_custom_call.1} parent=27 // pred_fallthru
          _
      $region28: #{tpu_custom_call.1} parent=5 // pred_fallthru
        _
      %p294 = scmp.le.s32.totalorder 2, %s15
      // Predicated region
      $region41: #{tpu_custom_call.1} parent=5 // pred_check
        %p295 = pneg %p294
      $region42: #{tpu_custom_call.1} parent=5 // pred_check_branch
        %297 = sbr.rel (%p295) target = $region44
      $region43: #{tpu_custom_call.1} parent=5 // pred_region
        %s298 = ssub.s32 %s15, 2
        // Predicated region
        $region45: #{tpu_custom_call.1} parent=43 // pred_check
          %p299 = pneg %p107
        $region46: #{tpu_custom_call.1} parent=43 // pred_check_branch
          %301 = sbr.rel (%p299) target = $region48
        $region47: #{tpu_custom_call.1} parent=43 // pred_region
          %s302 = sand.u32 %s92, 1
          %s303 = scalar_lea.sflag [#allocation4], %s302
          %s304 = sand.u32 %s92, 1
          %s305 = smul.addr %s304, 16
          %s306 = scalar_lea.vmem [#allocation7], %s305
          %307 = dma.done %s303, 256
        $region48: #{tpu_custom_call.1} parent=43 // pred_fallthru
          _
      $region44: #{tpu_custom_call.1} parent=5 // pred_fallthru
        _
    $region6: #{tpu_custom_call.1} parent=1 // loop_footer
      %s19 = sadd.s32 1, %s15
    $region7: #{tpu_custom_call.1} parent=1 // loop_footer_branch
      %14 = sbr.rel target = $region3
    $region8: #{tpu_custom_call.1} parent=1 // loop_exit
      _
    %308 = vsyncpa [#allocation3], 1
    %s309 = scalar_lea.sflag [#allocation3], 1
    %310 = vsyncpa %s309, 1
    %311 = vsyncpa [#allocation4], 1
    %s312 = scalar_lea.sflag [#allocation4], 1
    %313 = vsyncpa %s312, 1
    %314 = vsyncpa [#allocation5], 1
    %s315 = scalar_lea.sflag [#allocation5], 1
    %316 = vsyncpa %s315, 1

</llo_original>
